<compile_context>
chip_gen: v7x
topology: tpu7x:2x2x1
jax: 0.10.0
libtpu: 0.0.40
codegen_flags: <defaults>
</compile_context>

<pallas_src>
import itertools

import numpy as np
import jax
import jax.numpy as jnp
from jax import lax
from jax.experimental import pallas as pl
from jax.experimental.pallas import tpu as pltpu

BUCKET_BINS = [0, 1, 2, 3, 4, 5, 7, 8, 15, 16, 31, 32, 63, 64]
LANE = 128


def _round_up(x, m):
    return (x + m - 1) // m * m


def _min_distance(a, b, c, d):
    return min(abs(b - c), abs(a - d))


def _bucket_index(width):
    # [ix for ix, v in enumerate(bins) if width >= v][-1]
    return max(ix for ix, v in enumerate(BUCKET_BINS) if width >= v)


# ----------------------------------------------------------------------------
# Single fused kernel: per-tile gather (target rows, opinion rows, distance
# rows, optional dep-embedding average) and lane-dense concat+store.
# ----------------------------------------------------------------------------
def _pair_kernel(use_dep, tile, width, c_pad):
    def kernel(*refs):
        if use_dep:
            (tgt_ref, opi_ref, bkt_ref, depw_ref,
             spans_ref, dist_ref, dep_ref, out_ref) = refs
        else:
            tgt_ref, opi_ref, bkt_ref, spans_ref, dist_ref, out_ref = refs

        spans = spans_ref[...]     # (B*N, S)   — VMEM-resident across the grid
        dist = dist_ref[...]       # (14, Ddist)

        def gather(idx_col, table):
            # Row gather via one-hot matmul on the (otherwise idle) MXU.
            n = table.shape[0]
            onehot = (idx_col == lax.broadcasted_iota(jnp.int32, (tile, n), 1)
                      ).astype(jnp.float32)
            return jnp.dot(onehot, table, preferred_element_type=jnp.float32)

        pieces = [gather(tgt_ref[...], spans),       # (tile, S)
                  gather(opi_ref[...], spans),       # (tile, S)
                  gather(bkt_ref[...], dist)]        # (tile, Ddist)
        if use_dep:
            # Weighted label-count matrix @ dep table == sum(dep_emb(labels)) * scale
            pieces.append(jnp.dot(depw_ref[...], dep_ref[...],
                                  preferred_element_type=jnp.float32))
        if c_pad > width:
            pieces.append(jnp.zeros((tile, c_pad - width), jnp.float32))
        # One lane-dense (multiple of 128) store per tile.
        out_ref[...] = jnp.concatenate(pieces, axis=1)

    return kernel


def _pair_concat(spans_flat, dist_table, tgt_idx, opi_idx, bkt_idx,
                 dep_weights=None, dep_table=None):
    """spans_flat: (B*N, S) f32; dist_table: (14, Ddist) f32;
    *_idx: (num_rows,) int32 numpy; dep_weights: (num_rows, dep_size) f32 numpy
    or None; dep_table: (dep_size, dep_dim) f32 or None.
    Returns (num_rows, 2S+Ddist[+dep_dim]) f32."""
    use_dep = dep_weights is not None
    num_rows = int(tgt_idx.shape[0])
    S = int(spans_flat.shape[1])
    Dd = int(dist_table.shape[1])
    dep_dim = int(dep_table.shape[1]) if use_dep else 0
    dep_size = int(dep_table.shape[0]) if use_dep else 0
    width = 2 * S + Dd + dep_dim
    c_pad = _round_up(width, LANE)                     # lane-dense output

    # Tile rows to amortize the ~0.35 µs/grid-step overhead; working set is tiny
    # so VMEM capacity is never the constraint (even v7x's 64 MiB).
    tile = max(8, min(512, _round_up(num_rows, 8)))
    rows_pad = _round_up(num_rows, tile)
    grid = (rows_pad // tile,)

    def _pad_rows(a):
        pad = rows_pad - a.shape[0]
        if pad:
            a = np.pad(a, ((0, pad),) + ((0, 0),) * (a.ndim - 1))
        return a

    tgt = jnp.asarray(_pad_rows(tgt_idx).reshape(rows_pad, 1), dtype=jnp.int32)
    opi = jnp.asarray(_pad_rows(opi_idx).reshape(rows_pad, 1), dtype=jnp.int32)
    bkt = jnp.asarray(_pad_rows(bkt_idx).reshape(rows_pad, 1), dtype=jnp.int32)

    idx_spec = pl.BlockSpec((tile, 1), lambda i: (i, 0))
    in_specs = [idx_spec, idx_spec, idx_spec]
    args = [tgt, opi, bkt]
    if use_dep:
        in_specs.append(pl.BlockSpec((tile, dep_size), lambda i: (i, 0)))
        args.append(jnp.asarray(_pad_rows(dep_weights), dtype=jnp.float32))
    # Tables: whole-array blocks with constant index_map -> DMA'd once, resident.
    in_specs.append(pl.BlockSpec(spans_flat.shape, lambda i: (0, 0)))
    args.append(spans_flat)
    in_specs.append(pl.BlockSpec(dist_table.shape, lambda i: (0, 0)))
    args.append(dist_table)
    if use_dep:
        in_specs.append(pl.BlockSpec(dep_table.shape, lambda i: (0, 0)))
        args.append(dep_table)

    out = pl.pallas_call(
        _pair_kernel(use_dep, tile, width, c_pad),
        out_shape=jax.ShapeDtypeStruct((rows_pad, c_pad), jnp.float32),
        grid=grid,
        in_specs=in_specs,
        out_specs=pl.BlockSpec((tile, c_pad), lambda i: (i, 0)),
        compiler_params=pltpu.CompilerParams(dimension_semantics=("parallel",)),
    )(*args)
    return out[:num_rows, :width]


# ----------------------------------------------------------------------------
# Forward (host glue + fused Pallas kernel).
# ----------------------------------------------------------------------------
def pair_representation_forward(params, spans, span_indices, label_lst,
                                target_indices, opinion_indices, use_dep):
    dist_table = params["dist_table"].astype(jnp.float32)
    dep_table = params["dep_table"].astype(jnp.float32)
    B, N, S = spans.shape
    Ddist = int(dist_table.shape[1])
    dep_dim = int(dep_table.shape[1])

    candidate_indices, relation_indices, triplet_R = [], [], []
    tgt_l, opi_l, bkt_l = [], [], []
    pairs_per_batch = None

    for b in range(B):
        pairs = list(itertools.product(list(target_indices[b]),
                                       list(opinion_indices[b])))
        relation_indices.append(pairs)
        if pairs_per_batch is None:
            pairs_per_batch = len(pairs)
        assert len(pairs) == pairs_per_batch  # torch.stack(candidate_pool) requirement

        for pair in pairs:
            a_, b_ = span_indices[pair[0]]
            c_, d_ = span_indices[pair[1]]
            candidate_indices.append((a_, b_, c_, d_))

            # triplet_R: dependency labels of in-between word pairs
            if c_ >= b_:
                R_l = list(range(a_, b_)); R_r = list(range(c_ + 1, d_ + 1))
            else:
                R_l = list(range(c_, d_)); R_r = list(range(a_ + 1, b_ + 1))
            R = list(itertools.product(R_l, R_r))
            x = []
            for idx in range(len(R)):
                for sid, indices in enumerate(span_indices):
                    if list(R[idx]) == list(indices):
                        x.append(label_lst[sid])
            triplet_R.append(x if x else [0])

            tgt_l.append(b * N + pair[0])
            opi_l.append(b * N + pair[1])
            bkt_l.append(_bucket_index(_min_distance(a_, b_, c_, d_)))

    tgt_idx = np.asarray(tgt_l, dtype=np.int32)
    opi_idx = np.asarray(opi_l, dtype=np.int32)
    bkt_idx = np.asarray(bkt_l, dtype=np.int32)
    spans_flat = spans.reshape(B * N, S).astype(jnp.float32)

    dep_weights = None
    if use_dep:
        # Weighted label-count matrix: row i holds counts of each dep label in
        # triplet_R[i]; scaled by 1/T (T = TOTAL #pairs) when len > 1, faithfully
        # reproducing the original module's quirk (division by len(triplet_R),
        # not len(labels)).  Only real labels contribute -> no reliance on
        # dep_table[0] being an all-zero row.
        T = len(triplet_R)
        dep_size = int(dep_table.shape[0])
        dep_weights = np.zeros((T, dep_size), dtype=np.float32)
        for i, labels in enumerate(triplet_R):
            for lab in labels:
                dep_weights[i, lab] += 1.0
            if len(labels) > 1:
                dep_weights[i] /= float(T)

    out_flat = _pair_concat(spans_flat, dist_table, tgt_idx, opi_idx, bkt_idx,
                            dep_weights=dep_weights,
                            dep_table=dep_table if use_dep else None)

    width = 2 * S + Ddist + (dep_dim if use_dep else 0)
    # The original's use_dep concat ((B,P,C) with (1,T,dep)) is only
    # shape-consistent for B == 1, which this flat layout reproduces exactly.
    out = out_flat.reshape(B, pairs_per_batch, width)
    return out, candidate_indices, relation_indices


# ----------------------------------------------------------------------------
# Pure-numpy reference (mirrors the PyTorch forward exactly) for verification.
# ----------------------------------------------------------------------------
def reference_forward(params, spans, span_indices, label_lst,
                      target_indices, opinion_indices, use_dep):
    dist_table = np.asarray(params["dist_table"])
    dep_table = np.asarray(params["dep_table"])
    spans_np = np.asarray(spans)
    B = spans_np.shape[0]

    candidate_pool, triplet_R = [], []
    for b in range(B):
        pairs = list(itertools.product(list(target_indices[b]),
                                       list(opinion_indices[b])))
        rows = []
        for pair in pairs:
            a_, b_ = span_indices[pair[0]]
            c_, d_ = span_indices[pair[1]]
            width = min(abs(b_ - c_), abs(a_ - d_))
            em = [ix for ix, v in enumerate(BUCKET_BINS) if width >= v][-1]
            rows.append(np.concatenate([spans_np[b, pair[0]],
                                        spans_np[b, pair[1]],
                                        dist_table[em]], axis=0))
            if c_ >= b_:
                R_l = list(range(a_, b_)); R_r = list(range(c_ + 1, d_ + 1))
            else:
                R_l = list(range(c_, d_)); R_r = list(range(a_ + 1, b_ + 1))
            R = list(itertools.product(R_l, R_r))
            x = []
            for idx in range(len(R)):
                for sid, indices in enumerate(span_indices):
                    if list(R[idx]) == list(indices):
                        x.append(label_lst[sid])
            triplet_R.append(x if x else [0])
        candidate_pool.append(np.stack(rows))
    cp = np.stack(candidate_pool)
    if not use_dep:
        return cp
    T = len(triplet_R)
    dep_rows = []
    for x in triplet_R:
        if len(x) == 1:
            dep_rows.append(dep_table[x[0]])
        else:
            dep_rows.append(dep_table[np.asarray(x)].sum(0) / T)
    dep_embs = np.stack(dep_rows)
    return np.concatenate([cp, dep_embs[None]], axis=2)


if __name__ == "__main__":
    key = jax.random.PRNGKey(0)
    k1, k2, k3 = jax.random.split(key, 3)

    # args: span_dim=32, triplet_distance_dim=16, dep_size=10, dep_dim=8
    B, N, S = 2, 6, 32
    Ddist, dep_size, dep_dim = 16, 10, 8

    spans = jax.random.normal(k1, (B, N, S), dtype=jnp.float32)
    dist_table = jax.random.normal(k2, (len(BUCKET_BINS), Ddist), dtype=jnp.float32)
    dep_table = jax.random.normal(k3, (dep_size, dep_dim), dtype=jnp.float32)
    dep_table = dep_table.at[0].set(0.0)  # nn.Embedding padding_idx=0
    params = {"dist_table": dist_table, "dep_table": dep_table}

    span_indices = [[0, 2], [3, 5], [0, 3], [2, 4], [1, 5], [0, 5]]
    label_lst = [1, 2, 3, 4, 5, 6]
    target_indices = [[0, 2], [1, 4]]
    opinion_indices = [[1, 5], [0, 3]]

    # --- path 1: triplet_use_dep = False (batch = 2) ---
    out, cand_idx, rel_idx = pair_representation_forward(
        params, spans, span_indices, label_lst,
        target_indices, opinion_indices, use_dep=False)
    out = jax.block_until_ready(out)
    ref = reference_forward(params, spans, span_indices, label_lst,
                            target_indices, opinion_indices, use_dep=False)
    np.testing.assert_allclose(np.asarray(out), ref, rtol=1e-5, atol=1e-5)

    # --- path 2: triplet_use_dep = True (batch = 1, as the original concat requires) ---
    out2, _, _ = pair_representation_forward(
        params, spans[:1], span_indices, label_lst,
        target_indices[:1], opinion_indices[:1], use_dep=True)
    out2 = jax.block_until_ready(out2)
    ref2 = reference_forward(params, spans[:1], span_indices, label_lst,
                             target_indices[:1], opinion_indices[:1], use_dep=True)
    np.testing.assert_allclose(np.asarray(out2), ref2, rtol=1e-5, atol=1e-5)

    print("KERNEL_OK")
</pallas_src>

<mosaic_0001>
module attributes {stable_mosaic.version = 11 : i64} {
  func.func @kernel(%arg0: i32, %arg1: memref<8x1xi32, #tpu.memory_space<vmem>>, %arg2: memref<8x1xi32, #tpu.memory_space<vmem>>, %arg3: memref<8x1xi32, #tpu.memory_space<vmem>>, %arg4: memref<12x32xf32, #tpu.memory_space<vmem>>, %arg5: memref<14x16xf32, #tpu.memory_space<vmem>>, %arg6: memref<8x128xf32, #tpu.memory_space<vmem>>) attributes {dimension_semantics = [#tpu.dimension_semantics<parallel>], iteration_bounds = array<i64: 1>, scalar_prefetch = 0 : i64, scratch_operands = 0 : i64, tpu.core_type = #tpu.core_type<tc>, window_params = [{transform_indices = @transform_0, window_bounds = array<i64: 8, 1>}, {transform_indices = @transform_1, window_bounds = array<i64: 8, 1>}, {transform_indices = @transform_2, window_bounds = array<i64: 8, 1>}, {pipeline_mode = #tpu.pipeline_mode<synchronous>, transform_indices = @transform_3, window_bounds = array<i64: 12, 32>}, {pipeline_mode = #tpu.pipeline_mode<synchronous>, transform_indices = @transform_4, window_bounds = array<i64: 14, 16>}, {transform_indices = @transform_5, window_bounds = array<i64: 8, 128>}]} {
    %c0 = arith.constant 0 : index
    %c0_0 = arith.constant 0 : index
    %0 = vector.load %arg4[%c0, %c0_0] : memref<12x32xf32, #tpu.memory_space<vmem>>, vector<12x32xf32>
    %c0_1 = arith.constant 0 : index
    %c0_2 = arith.constant 0 : index
    %1 = vector.load %arg5[%c0_1, %c0_2] : memref<14x16xf32, #tpu.memory_space<vmem>>, vector<14x16xf32>
    %c0_3 = arith.constant 0 : index
    %c0_4 = arith.constant 0 : index
    %2 = vector.load %arg1[%c0_3, %c0_4] : memref<8x1xi32, #tpu.memory_space<vmem>>, vector<8x1xi32>
    %3 = tpu.iota {dimensions = array<i32: 1>} : vector<8x12xi32>
    %4 = vector.broadcast %2 : vector<8x1xi32> to vector<8x12xi32>
    %5 = arith.cmpi eq, %4, %3 : vector<8x12xi32>
    %6 = arith.extui %5 : vector<8x12xi1> to vector<8x12xi32>
    %7 = arith.sitofp %6 : vector<8x12xi32> to vector<8x12xf32>
    %cst = arith.constant dense<0.000000e+00> : vector<8x32xf32>
    %8 = tpu.matmul %7, %0, %cst {dimension_numbers = #tpu.dot_dimension_numbers<[1], [0], [0], [1], [0, 0, 1, 1], [], []>} : vector<8x12xf32>, vector<12x32xf32>, vector<8x32xf32> -> vector<8x32xf32>
    %c0_5 = arith.constant 0 : index
    %c0_6 = arith.constant 0 : index
    %9 = vector.load %arg2[%c0_5, %c0_6] : memref<8x1xi32, #tpu.memory_space<vmem>>, vector<8x1xi32>
    %10 = tpu.iota {dimensions = array<i32: 1>} : vector<8x12xi32>
    %11 = vector.broadcast %9 : vector<8x1xi32> to vector<8x12xi32>
    %12 = arith.cmpi eq, %11, %10 : vector<8x12xi32>
    %13 = arith.extui %12 : vector<8x12xi1> to vector<8x12xi32>
    %14 = arith.sitofp %13 : vector<8x12xi32> to vector<8x12xf32>
    %cst_7 = arith.constant dense<0.000000e+00> : vector<8x32xf32>
    %15 = tpu.matmul %14, %0, %cst_7 {dimension_numbers = #tpu.dot_dimension_numbers<[1], [0], [0], [1], [0, 0, 1, 1], [], []>} : vector<8x12xf32>, vector<12x32xf32>, vector<8x32xf32> -> vector<8x32xf32>
    %c0_8 = arith.constant 0 : index
    %c0_9 = arith.constant 0 : index
    %16 = vector.load %arg3[%c0_8, %c0_9] : memref<8x1xi32, #tpu.memory_space<vmem>>, vector<8x1xi32>
    %17 = tpu.iota {dimensions = array<i32: 1>} : vector<8x14xi32>
    %18 = vector.broadcast %16 : vector<8x1xi32> to vector<8x14xi32>
    %19 = arith.cmpi eq, %18, %17 : vector<8x14xi32>
    %20 = arith.extui %19 : vector<8x14xi1> to vector<8x14xi32>
    %21 = arith.sitofp %20 : vector<8x14xi32> to vector<8x14xf32>
    %cst_10 = arith.constant dense<0.000000e+00> : vector<8x16xf32>
    %22 = tpu.matmul %21, %1, %cst_10 {dimension_numbers = #tpu.dot_dimension_numbers<[1], [0], [0], [1], [0, 0, 1, 1], [], []>} : vector<8x14xf32>, vector<14x16xf32>, vector<8x16xf32> -> vector<8x16xf32>
    %cst_11 = arith.constant 0.000000e+00 : f32
    %23 = vector.broadcast %cst_11 : f32 to vector<8x48xf32>
    %24 = tpu.concatenate %8, %15, %22, %23 in 1 : vector<8x32xf32>, vector<8x32xf32>, vector<8x16xf32>, vector<8x48xf32> -> vector<8x128xf32>
    %c0_12 = arith.constant 0 : index
    %c0_13 = arith.constant 0 : index
    %25 = vector.load %arg6[%c0_12, %c0_13] : memref<8x128xf32, #tpu.memory_space<vmem>>, vector<8x128xf32>
    tpu.vector_store %arg6[%c0_12, %c0_13], %24 {strides = array<i32>} : memref<8x128xf32, #tpu.memory_space<vmem>>, vector<8x128xf32>,
    return
  }
  func.func @transform_0(%arg0: i32) -> (i32, i32) {
    %c0_i32 = arith.constant 0 : i32
    %c0_i32_0 = arith.constant 0 : i32
    return %arg0, %c0_i32 : i32, i32
  }
  func.func @transform_1(%arg0: i32) -> (i32, i32) {
    %c0_i32 = arith.constant 0 : i32
    %c0_i32_0 = arith.constant 0 : i32
    return %arg0, %c0_i32 : i32, i32
  }
  func.func @transform_2(%arg0: i32) -> (i32, i32) {
    %c0_i32 = arith.constant 0 : i32
    %c0_i32_0 = arith.constant 0 : i32
    return %arg0, %c0_i32 : i32, i32
  }
  func.func @transform_3(%arg0: i32) -> (i32, i32) {
    %c0_i32 = arith.constant 0 : i32
    %c0_i32_0 = arith.constant 0 : i32
    %c0_i32_1 = arith.constant 0 : i32
    return %c0_i32, %c0_i32_0 : i32, i32
  }
  func.func @transform_4(%arg0: i32) -> (i32, i32) {
    %c0_i32 = arith.constant 0 : i32
    %c0_i32_0 = arith.constant 0 : i32
    %c0_i32_1 = arith.constant 0 : i32
    return %c0_i32, %c0_i32_0 : i32, i32
  }
  func.func @transform_5(%arg0: i32) -> (i32, i32) {
    %c0_i32 = arith.constant 0 : i32
    %c0_i32_0 = arith.constant 0 : i32
    return %arg0, %c0_i32 : i32, i32
  }
}

</mosaic_0001>

<llo_original>
// kernel: tpu_custom_call.1
$region0: #{tpu_custom_call.1}
  #allocation0 [shape = 'u32[]', space=smem, size = 0x4, offset = 0x4, fixed_abs, tag = 'smem constant byte address 0x4 - core index']
  #allocation1 [shape = 'u32[144,128]{1,0:T(1,128)}', space=vmem, size = 0x12000, scoped, tag = 'internal scratch']
  %s0 = inlined_call_operand.vmem [shape: s32[8,1], index: 0, kind: input, shape index: {}]
  %s1 = inlined_call_operand.vmem [shape: s32[8,1], index: 1, kind: input, shape index: {}]
  %s2 = inlined_call_operand.vmem [shape: s32[8,1], index: 2, kind: input, shape index: {}]
  %s3 = inlined_call_operand.vmem [shape: f32[12,32], index: 3, kind: input, shape index: {}]
  %s4 = inlined_call_operand.vmem [shape: f32[14,16], index: 4, kind: input, shape index: {}]
  %s5 = inlined_call_operand.hbm [shape: f32[8,128], index: 5, kind: output, shape index: {}]
  %s6 = sld [smem:[#allocation0]]
  $region30: #{tpu_custom_call.1} parent=0
    _
  %s8 = ssub.s32 1, %s6
  %s9 = scalar_select 0, %s8, %s6
  $region1: #{tpu_custom_call.1} parent=0
    #allocation2 [shape = 'u8[4096]{0}', space=vmem, size = 0x1000, scoped, tag = 'output window, operand 0, single buffered']
    #allocation3 [shape = 's32[1]{0}', space=sflag, size = 0x4, scoped, tag = 'scoped memory for tpu_custom_call.1']
    %10 = vsyncpa [#allocation3], 0
    // Predicated region
    $region2: #{tpu_custom_call.1} parent=1 // pred_check
      _
    $region3: #{tpu_custom_call.1} parent=1 // pred_check_branch
      %12 = sbr.rel (0) target = $region5
    $region4: #{tpu_custom_call.1} parent=1 // pred_region
      _
    $region5: #{tpu_custom_call.1} parent=1 // pred_fallthru
      _
    // Predicated region
    $region6: #{tpu_custom_call.1} parent=1 // pred_check
      _
    $region7: #{tpu_custom_call.1} parent=1 // pred_check_branch
      %14 = sbr.rel (0) target = $region9
    $region8: #{tpu_custom_call.1} parent=1 // pred_region
      _
    $region9: #{tpu_custom_call.1} parent=1 // pred_fallthru
      _
    // Predicated region
    $region10: #{tpu_custom_call.1} parent=1 // pred_check
      _
    $region11: #{tpu_custom_call.1} parent=1 // pred_check_branch
      %16 = sbr.rel (0) target = $region13
    $region12: #{tpu_custom_call.1} parent=1 // pred_region
      _
    $region13: #{tpu_custom_call.1} parent=1 // pred_fallthru
      _
    // Predicated region
    $region14: #{tpu_custom_call.1} parent=1 // pred_check
      _
    $region15: #{tpu_custom_call.1} parent=1 // pred_check_branch
      %18 = sbr.rel (0) target = $region17
    $region16: #{tpu_custom_call.1} parent=1 // pred_region
      _
    $region17: #{tpu_custom_call.1} parent=1 // pred_fallthru
      _
    // Predicated region
    $region18: #{tpu_custom_call.1} parent=1 // pred_check
      _
    $region19: #{tpu_custom_call.1} parent=1 // pred_check_branch
      %20 = sbr.rel (0) target = $region21
    $region20: #{tpu_custom_call.1} parent=1 // pred_region
      _
    $region21: #{tpu_custom_call.1} parent=1 // pred_fallthru
      _
    %v21 = vld [vmem:[%s3] sm:$0xff]
    %v22 = vld [vmem:[%s3 + $0x8] sm:$0xf]
    %v23 = vld [vmem:[%s4] sm:$0xff]
    %v24 = vld [vmem:[%s4 + $0x8] sm:$0x3f]
    %v25 = vld [vmem:[%s0] sm:$0xff]
    %v26 = vlaneseq
    %v27 = vand.u32 %v26, 127
    %28 = vset.pattern.permute.xlu0 0
    %29 = vperm.xlu0 %28, %v25
    %v30 = vpop.permute.xlu0 %29
    %vm31 = vcmp.eq.s32.totalorder %v30, %v27
    %v32 = vsel %vm31, 1, 0
    %v33 = vcvt.s32.f32 %v32
    %vm34 = vcmask 97280
    %v36 = vsel %vm34, %v33, 0
    %vm38 = vcmask 1043456
    %v40 = vsel %vm38, %v22, 0
    %42 = vmatprep.subr.mxu0 0.0
    %43 = vmatpush1.msra.mxu0 %v21
    %44 = vmatprep.subr.mxu0 0.0
    %45 = vmatpush1.msra.mxu0 %v40
    %46 = vmatprep.subr.mxu0 0.0
    %47 = vmatpush1.msra.mxu0 0.0
    %48 = vmatprep.subr.mxu0 0.0
    %49 = vmatpush1.msra.mxu0 0.0
    %50 = vmatprep.subr.mxu0 0.0
    %51 = vmatpush1.msra.mxu0 0.0
    %52 = vmatprep.subr.mxu0 0.0
    %53 = vmatpush1.msra.mxu0 0.0
    %54 = vmatprep.subr.mxu0 0.0
    %55 = vmatpush1.msra.mxu0 0.0
    %56 = vmatprep.subr.mxu0 0.0
    %57 = vmatpush1.msra.mxu0 0.0
    %58 = vmatprep.subr.mxu0 0.0
    %59 = vmatpush1.msra.mxu0 0.0
    %60 = vmatprep.subr.mxu0 0.0
    %61 = vmatpush1.msra.mxu0 0.0
    %62 = vmatprep.subr.mxu0 0.0
    %63 = vmatpush1.msra.mxu0 0.0
    %64 = vmatprep.subr.mxu0 0.0
    %65 = vmatpush1.msra.mxu0 0.0
    %66 = vmatprep.subr.mxu0 0.0
    %67 = vmatpush1.msra.mxu0 0.0
    %68 = vmatprep.subr.mxu0 0.0
    %69 = vmatpush1.msra.mxu0 0.0
    %70 = vmatprep.subr.mxu0 0.0
    %71 = vmatpush1.msra.mxu0 0.0
    %72 = vmatprep.subr.mxu0 0.0
    %73 = vmatpush1.msra.mxu0 0.0
    %74 = vmatprep.subr.mxu0 0.0
    %75 = vmatpush1.msra.mxu0 0.0
    %76 = vmatprep.subr.mxu0 0.0
    %77 = vmatpush1.msra.mxu0 0.0
    %78 = vmatprep.subr.mxu0 0.0
    %79 = vmatpush1.msra.mxu0 0.0
    %80 = vmatprep.subr.mxu0 0.0
    %81 = vmatpush1.msra.mxu0 0.0
    %82 = vmatprep.subr.mxu0 0.0
    %83 = vmatpush1.msra.mxu0 0.0
    %84 = vmatprep.subr.mxu0 0.0
    %85 = vmatpush1.msra.mxu0 0.0
    %86 = vmatprep.subr.mxu0 0.0
    %87 = vmatpush1.msra.mxu0 0.0
    %88 = vmatprep.subr.mxu0 0.0
    %89 = vmatpush1.msra.mxu0 0.0
    %90 = vmatprep.subr.mxu0 0.0
    %91 = vmatpush1.msra.mxu0 0.0
    %92 = vmatprep.subr.mxu0 0.0
    %93 = vmatpush1.msra.mxu0 0.0
    %94 = vmatprep.subr.mxu0 0.0
    %95 = vmatpush1.msra.mxu0 0.0
    %96 = vmatprep.subr.mxu0 0.0
    %97 = vmatpush1.msra.mxu0 0.0
    %98 = vmatprep.subr.mxu0 0.0
    %99 = vmatpush1.msra.mxu0 0.0
    %100 = vmatprep.subr.mxu0 0.0
    %101 = vmatpush1.msra.mxu0 0.0
    %102 = vmatprep.subr.mxu0 0.0
    %103 = vmatpush1.msra.mxu0 0.0
    %104 = vmatprep.subr.mxu0 0.0
    %105 = vmatpush1.msra.mxu0 0.0
    %106 = vmatprep.mubr.f32.mxu0 0.0
    %107 = vmatmul.mubr.f32.gmra.mrb[0].mxu0 %v36
    %v108 = vpop.f32.mrb[0].mxu0
    %v109 = vadd.f32 0.0, %v108
    %v110 = vpop.f32.mrb[0].mxu0
    %111 = vdwg.mxu0
    %v112 = vld [vmem:[%s1] sm:$0xff]
    %113 = vset.pattern.permute.xlu0 0
    %114 = vperm.xlu0 %113, %v112
    %v115 = vpop.permute.xlu0 %114
    %vm116 = vcmp.eq.s32.totalorder %v115, %v27
    %v117 = vsel %vm116, 1, 0
    %v118 = vcvt.s32.f32 %v117
    %v120 = vsel %vm34, %v118, 0
    %122 = vmatprep.subr.mxu0 0.0
    %123 = vmatpush1.msra.mxu0 %v21
    %124 = vmatprep.subr.mxu0 0.0
    %125 = vmatpush1.msra.mxu0 %v40
    %126 = vmatprep.subr.mxu0 0.0
    %127 = vmatpush1.msra.mxu0 0.0
    %128 = vmatprep.subr.mxu0 0.0
    %129 = vmatpush1.msra.mxu0 0.0
    %130 = vmatprep.subr.mxu0 0.0
    %131 = vmatpush1.msra.mxu0 0.0
    %132 = vmatprep.subr.mxu0 0.0
    %133 = vmatpush1.msra.mxu0 0.0
    %134 = vmatprep.subr.mxu0 0.0
    %135 = vmatpush1.msra.mxu0 0.0
    %136 = vmatprep.subr.mxu0 0.0
    %137 = vmatpush1.msra.mxu0 0.0
    %138 = vmatprep.subr.mxu0 0.0
    %139 = vmatpush1.msra.mxu0 0.0
    %140 = vmatprep.subr.mxu0 0.0
    %141 = vmatpush1.msra.mxu0 0.0
    %142 = vmatprep.subr.mxu0 0.0
    %143 = vmatpush1.msra.mxu0 0.0
    %144 = vmatprep.subr.mxu0 0.0
    %145 = vmatpush1.msra.mxu0 0.0
    %146 = vmatprep.subr.mxu0 0.0
    %147 = vmatpush1.msra.mxu0 0.0
    %148 = vmatprep.subr.mxu0 0.0
    %149 = vmatpush1.msra.mxu0 0.0
    %150 = vmatprep.subr.mxu0 0.0
    %151 = vmatpush1.msra.mxu0 0.0
    %152 = vmatprep.subr.mxu0 0.0
    %153 = vmatpush1.msra.mxu0 0.0
    %154 = vmatprep.subr.mxu0 0.0
    %155 = vmatpush1.msra.mxu0 0.0
    %156 = vmatprep.subr.mxu0 0.0
    %157 = vmatpush1.msra.mxu0 0.0
    %158 = vmatprep.subr.mxu0 0.0
    %159 = vmatpush1.msra.mxu0 0.0
    %160 = vmatprep.subr.mxu0 0.0
    %161 = vmatpush1.msra.mxu0 0.0
    %162 = vmatprep.subr.mxu0 0.0
    %163 = vmatpush1.msra.mxu0 0.0
    %164 = vmatprep.subr.mxu0 0.0
    %165 = vmatpush1.msra.mxu0 0.0
    %166 = vmatprep.subr.mxu0 0.0
    %167 = vmatpush1.msra.mxu0 0.0
    %168 = vmatprep.subr.mxu0 0.0
    %169 = vmatpush1.msra.mxu0 0.0
    %170 = vmatprep.subr.mxu0 0.0
    %171 = vmatpush1.msra.mxu0 0.0
    %172 = vmatprep.subr.mxu0 0.0
    %173 = vmatpush1.msra.mxu0 0.0
    %174 = vmatprep.subr.mxu0 0.0
    %175 = vmatpush1.msra.mxu0 0.0
    %176 = vmatprep.subr.mxu0 0.0
    %177 = vmatpush1.msra.mxu0 0.0
    %178 = vmatprep.subr.mxu0 0.0
    %179 = vmatpush1.msra.mxu0 0.0
    %180 = vmatprep.subr.mxu0 0.0
    %181 = vmatpush1.msra.mxu0 0.0
    %182 = vmatprep.subr.mxu0 0.0
    %183 = vmatpush1.msra.mxu0 0.0
    %184 = vmatprep.subr.mxu0 0.0
    %185 = vmatpush1.msra.mxu0 0.0
    %186 = vmatprep.mubr.f32.mxu0 0.0
    %187 = vmatmul.mubr.f32.gmra.mrb[0].mxu0 %v120
    %v188 = vpop.f32.mrb[0].mxu0
    %v189 = vadd.f32 0.0, %v188
    %v190 = vpop.f32.mrb[0].mxu0
    %191 = vdwg.mxu0
    %v192 = vld [vmem:[%s2] sm:$0xff]
    %193 = vset.pattern.permute.xlu0 0
    %194 = vperm.xlu0 %193, %v192
    %v195 = vpop.permute.xlu0 %194
    %vm196 = vcmp.eq.s32.totalorder %v195, %v27
    %v197 = vsel %vm196, 1, 0
    %v198 = vcvt.s32.f32 %v197
    %vm199 = vcmask 113664
    %v201 = vsel %vm199, %v198, 0
    %vm203 = vcmask 1045504
    %v205 = vsel %vm203, %v24, 0
    %207 = vmatprep.subr.mxu0 0.0
    %208 = vmatpush1.msra.mxu0 %v23
    %209 = vmatprep.subr.mxu0 0.0
    %210 = vmatpush1.msra.mxu0 %v205
    %211 = vmatprep.subr.mxu0 0.0
    %212 = vmatpush1.msra.mxu0 0.0
    %213 = vmatprep.subr.mxu0 0.0
    %214 = vmatpush1.msra.mxu0 0.0
    %215 = vmatprep.subr.mxu0 0.0
    %216 = vmatpush1.msra.mxu0 0.0
    %217 = vmatprep.subr.mxu0 0.0
    %218 = vmatpush1.msra.mxu0 0.0
    %219 = vmatprep.subr.mxu0 0.0
    %220 = vmatpush1.msra.mxu0 0.0
    %221 = vmatprep.subr.mxu0 0.0
    %222 = vmatpush1.msra.mxu0 0.0
    %223 = vmatprep.subr.mxu0 0.0
    %224 = vmatpush1.msra.mxu0 0.0
    %225 = vmatprep.subr.mxu0 0.0
    %226 = vmatpush1.msra.mxu0 0.0
    %227 = vmatprep.subr.mxu0 0.0
    %228 = vmatpush1.msra.mxu0 0.0
    %229 = vmatprep.subr.mxu0 0.0
    %230 = vmatpush1.msra.mxu0 0.0
    %231 = vmatprep.subr.mxu0 0.0
    %232 = vmatpush1.msra.mxu0 0.0
    %233 = vmatprep.subr.mxu0 0.0
    %234 = vmatpush1.msra.mxu0 0.0
    %235 = vmatprep.subr.mxu0 0.0
    %236 = vmatpush1.msra.mxu0 0.0
    %237 = vmatprep.subr.mxu0 0.0
    %238 = vmatpush1.msra.mxu0 0.0
    %239 = vmatprep.subr.mxu0 0.0
    %240 = vmatpush1.msra.mxu0 0.0
    %241 = vmatprep.subr.mxu0 0.0
    %242 = vmatpush1.msra.mxu0 0.0
    %243 = vmatprep.subr.mxu0 0.0
    %244 = vmatpush1.msra.mxu0 0.0
    %245 = vmatprep.subr.mxu0 0.0
    %246 = vmatpush1.msra.mxu0 0.0
    %247 = vmatprep.subr.mxu0 0.0
    %248 = vmatpush1.msra.mxu0 0.0
    %249 = vmatprep.subr.mxu0 0.0
    %250 = vmatpush1.msra.mxu0 0.0
    %251 = vmatprep.subr.mxu0 0.0
    %252 = vmatpush1.msra.mxu0 0.0
    %253 = vmatprep.subr.mxu0 0.0
    %254 = vmatpush1.msra.mxu0 0.0
    %255 = vmatprep.subr.mxu0 0.0
    %256 = vmatpush1.msra.mxu0 0.0
    %257 = vmatprep.subr.mxu0 0.0
    %258 = vmatpush1.msra.mxu0 0.0
    %259 = vmatprep.subr.mxu0 0.0
    %260 = vmatpush1.msra.mxu0 0.0
    %261 = vmatprep.subr.mxu0 0.0
    %262 = vmatpush1.msra.mxu0 0.0
    %263 = vmatprep.subr.mxu0 0.0
    %264 = vmatpush1.msra.mxu0 0.0
    %265 = vmatprep.subr.mxu0 0.0
    %266 = vmatpush1.msra.mxu0 0.0
    %267 = vmatprep.subr.mxu0 0.0
    %268 = vmatpush1.msra.mxu0 0.0
    %269 = vmatprep.subr.mxu0 0.0
    %270 = vmatpush1.msra.mxu0 0.0
    %271 = vmatprep.mubr.f32.mxu0 0.0
    %272 = vmatmul.mubr.f32.gmra.mrb[0].mxu0 %v201
    %v273 = vpop.f32.mrb[0].mxu0
    %v274 = vadd.f32 0.0, %v273
    %v275 = vpop.f32.mrb[0].mxu0
    %276 = vdwg.mxu0
    %278 = vrot.lane.b32.xlu0 %v189, 32
    %v279 = vpop.permute.xlu0 %278
    %282 = vrot.lane.b32.xlu0 %v274, 64
    %v283 = vpop.permute.xlu0 %282
    %vm285 = vcmask 261120
    %v286 = vsel %vm285, %v109, %v279
    %vm287 = vcmask 523264
    %v288 = vsel %vm287, %v286, %v283
    %vm289 = vcmask 654336
    %v290 = vsel %vm289, %v288, 0.0
    %291 = vst [vmem:[#allocation2] sm:$0xff] %v290
    // Predicated region
    $region22: #{tpu_custom_call.1} parent=1 // pred_check
      _
    $region23: #{tpu_custom_call.1} parent=1 // pred_check_branch
      %293 = sbr.rel (0) target = $region25
    $region24: #{tpu_custom_call.1} parent=1 // pred_region
      %s295 = ssub.s32 128, 128
      %296 = vsyncadd [#allocation3], %s295
      %s298 = sshll.u32 [#allocation2], 4
      %s299 = int_to_ptr.vmem [resolvable:$true] %s298
      %301 = dma.vmem_to_hbm [thread:$0]  %s299, 128, %s5, [#allocation3]
    $region25: #{tpu_custom_call.1} parent=1 // pred_fallthru
      _
    // Predicated region
    $region26: #{tpu_custom_call.1} parent=1 // pred_check
      _
    $region27: #{tpu_custom_call.1} parent=1 // pred_check_branch
      %303 = sbr.rel (0) target = $region29
    $region28: #{tpu_custom_call.1} parent=1 // pred_region
      %304 = dma.done [#allocation3], 128
    $region29: #{tpu_custom_call.1} parent=1 // pred_fallthru
      _
    %305 = vsyncpa [#allocation3], 1

</llo_original>
